<compile_context>
chip_gen: v7x
topology: tpu7x:2x2x1
jax: 0.10.0
libtpu: 0.0.40
codegen_flags: <defaults>
</compile_context>

<pallas_src>
import functools

import jax
import jax.numpy as jnp
from jax import lax
from jax.experimental import pallas as pl
from jax.experimental.pallas import tpu as pltpu


def _round_up(x, m):
    return (x + m - 1) // m * m


def _rot_lanes(a, s):
    """a: (C, L).  Returns r with r[:, p] = a[:, (p + s) % L].

    Static lane rotation; jnp.roll lowers to lane slices + a lane concat
    (XLU slot, off the VALU critical path).
    """
    if s == 0:
        return a
    return jnp.roll(a, -s, axis=1)


def block_kernel(x_ref, w1_ref, b1_ref, w2_ref, b2_ref, o_ref, *, H, W):
    """Fused conv1 -> ReLU -> conv2 for one batch element.

    x_ref : (Cin_p, H*W)       f32 VMEM  flattened NCHW plane (spatial on lanes)
    w1_ref: (Cout_p, 9*Cin_p)  f32 VMEM  tap-major, channel-minor
    b1_ref: (Cout_p, 1)        f32 VMEM
    w2_ref: (Cout_p, 9*Cout_p) f32 VMEM
    b2_ref: (Cout_p, 1)        f32 VMEM
    o_ref : (Cout_p, H*W)      f32 VMEM  "wide" output; valid window sliced in wrapper
    """
    x = x_ref[...]

    # ---- conv1: single MXU matmul, K = 9*Cin_p ----
    p1 = jnp.concatenate(
        [_rot_lanes(x, dy * W + dx) for dy in range(3) for dx in range(3)],
        axis=0)                                               # (9*Cin_p, H*W)
    h1 = jnp.dot(w1_ref[...], p1, preferred_element_type=jnp.float32)
    h1 = jnp.maximum(h1 + b1_ref[...], 0.0)                   # bias + ReLU (VPU)

    # ---- conv2: single MXU matmul, K = 9*Cout_p ----
    p2 = jnp.concatenate(
        [_rot_lanes(h1, dy * W + dx) for dy in range(3) for dx in range(3)],
        axis=0)                                               # (9*Cout_p, H*W)
    out = jnp.dot(w2_ref[...], p2, preferred_element_type=jnp.float32)
    o_ref[...] = (out + b2_ref[...]).astype(o_ref.dtype)      # lane-dense store


def block_forward(x_nchw, w1_oihw, b1, w2_oihw, b2):
    """PyTorch-semantics wrapper: NCHW in, NCHW out (no activation transposes)."""
    N, Cin, H, W = x_nchw.shape
    Cout = w1_oihw.shape[0]
    H2, W2 = H - 4, W - 4
    L = H * W

    # Sublane-align channel counts (exact zero padding).
    Cin_p = _round_up(Cin, 8)
    Cout_p = _round_up(Cout, 8)

    # Glue (all cheap): contiguous reshape of x, tiny weight repacks/pads.
    x_flat = x_nchw.reshape(N, Cin, L).astype(jnp.float32)
    if Cin_p != Cin:
        x_flat = jnp.pad(x_flat, ((0, 0), (0, Cin_p - Cin), (0, 0)))

    w1_p = jnp.pad(w1_oihw.astype(jnp.float32),
                   ((0, Cout_p - Cout), (0, Cin_p - Cin), (0, 0), (0, 0)))
    w2_p = jnp.pad(w2_oihw.astype(jnp.float32),
                   ((0, Cout_p - Cout), (0, Cout_p - Cout), (0, 0), (0, 0)))
    b1_p = jnp.pad(b1.astype(jnp.float32), (0, Cout_p - Cout)).reshape(Cout_p, 1)
    b2_p = jnp.pad(b2.astype(jnp.float32), (0, Cout_p - Cout)).reshape(Cout_p, 1)

    # k-index ordering = (dy, dx, c): matches the patch-slab concat order.
    w1m = jnp.transpose(w1_p, (0, 2, 3, 1)).reshape(Cout_p, 9 * Cin_p)
    w2m = jnp.transpose(w2_p, (0, 2, 3, 1)).reshape(Cout_p, 9 * Cout_p)

    kernel = functools.partial(block_kernel, H=H, W=W)

    flops = 2 * N * L * Cout_p * (9 * Cin_p + 9 * Cout_p)
    bytes_accessed = 4 * (x_flat.size + N * Cout_p * L + w1m.size + w2m.size
                          + 2 * Cout_p)

    out_wide = pl.pallas_call(
        kernel,
        out_shape=jax.ShapeDtypeStruct((N, Cout_p, L), jnp.float32),
        grid=(N,),
        in_specs=[
            pl.BlockSpec((None, Cin_p, L), lambda n: (n, 0, 0)),     # per-batch block
            pl.BlockSpec((Cout_p, 9 * Cin_p), lambda n: (0, 0)),     # weights resident
            pl.BlockSpec((Cout_p, 1), lambda n: (0, 0)),
            pl.BlockSpec((Cout_p, 9 * Cout_p), lambda n: (0, 0)),
            pl.BlockSpec((Cout_p, 1), lambda n: (0, 0)),
        ],
        out_specs=pl.BlockSpec((None, Cout_p, L), lambda n: (n, 0, 0)),
        compiler_params=pltpu.CompilerParams(
            dimension_semantics=("parallel",),      # shard batch across TCs on v7x
        ),
        cost_estimate=pl.CostEstimate(
            flops=flops, transcendentals=0, bytes_accessed=bytes_accessed),
    )(x_flat, w1m, b1_p, w2m, b2_p)

    # Free reshape back to (N, Cout_p, H, W); keep real channels + valid window.
    return out_wide.reshape(N, Cout_p, H, W)[:, :Cout, :H2, :W2]


def reference_forward(x_nchw, w1_oihw, b1, w2_oihw, b2):
    """Pure-JAX reference (lax conv), NCHW / OIHW, VALID padding."""
    dn = ("NCHW", "OIHW", "NCHW")
    h = lax.conv_general_dilated(x_nchw, w1_oihw, (1, 1), "VALID",
                                 dimension_numbers=dn,
                                 precision=lax.Precision.HIGHEST)
    h = h + b1[None, :, None, None]
    h = jnp.maximum(h, 0.0)
    o = lax.conv_general_dilated(h, w2_oihw, (1, 1), "VALID",
                                 dimension_numbers=dn,
                                 precision=lax.Precision.HIGHEST)
    return o + b2[None, :, None, None]


if __name__ == "__main__":
    # Small shapes consistent with Block(in_ch=4, out_ch=8) on a 16x16 image.
    N, Cin, Cout, H, W = 2, 4, 8, 16, 16

    key = jax.random.PRNGKey(0)
    kx, kw1, kb1, kw2, kb2 = jax.random.split(key, 5)

    x = jax.random.normal(kx, (N, Cin, H, W), dtype=jnp.float32)

    # Deterministic synthetic params (PyTorch-like uniform init scale).
    bound1 = 1.0 / (Cin * 9) ** 0.5
    w1 = jax.random.uniform(kw1, (Cout, Cin, 3, 3), jnp.float32, -bound1, bound1)
    b1 = jax.random.uniform(kb1, (Cout,), jnp.float32, -bound1, bound1)
    bound2 = 1.0 / (Cout * 9) ** 0.5
    w2 = jax.random.uniform(kw2, (Cout, Cout, 3, 3), jnp.float32, -bound2, bound2)
    b2 = jax.random.uniform(kb2, (Cout,), jnp.float32, -bound2, bound2)

    out = jax.block_until_ready(block_forward(x, w1, b1, w2, b2))
    ref = jax.block_until_ready(reference_forward(x, w1, b1, w2, b2))

    assert out.shape == (N, Cout, H - 4, W - 4), out.shape
    max_err = float(jnp.max(jnp.abs(out - ref)))
    assert max_err < 1e-3, max_err
    print("KERNEL_OK")
</pallas_src>

<mosaic_0001>
module attributes {stable_mosaic.version = 11 : i64} {
  func.func @block_kernel(%arg0: i32, %arg1: memref<1x8x256xf32, #tpu.memory_space<vmem>>, %arg2: memref<8x72xf32, #tpu.memory_space<vmem>>, %arg3: memref<8x1xf32, #tpu.memory_space<vmem>>, %arg4: memref<8x72xf32, #tpu.memory_space<vmem>>, %arg5: memref<8x1xf32, #tpu.memory_space<vmem>>, %arg6: memref<1x8x256xf32, #tpu.memory_space<vmem>>) attributes {dimension_semantics = [#tpu.dimension_semantics<parallel>], iteration_bounds = array<i64: 2>, scalar_prefetch = 0 : i64, scratch_operands = 0 : i64, tpu.core_type = #tpu.core_type<tc>, window_params = [{transform_indices = @transform_0, window_bounds = array<i64: 1, 8, 256>}, {pipeline_mode = #tpu.pipeline_mode<synchronous>, transform_indices = @transform_1, window_bounds = array<i64: 8, 72>}, {pipeline_mode = #tpu.pipeline_mode<synchronous>, transform_indices = @transform_2, window_bounds = array<i64: 8, 1>}, {pipeline_mode = #tpu.pipeline_mode<synchronous>, transform_indices = @transform_3, window_bounds = array<i64: 8, 72>}, {pipeline_mode = #tpu.pipeline_mode<synchronous>, transform_indices = @transform_4, window_bounds = array<i64: 8, 1>}, {transform_indices = @transform_5, window_bounds = array<i64: 1, 8, 256>}]} {
    %c0 = arith.constant 0 : index
    %c0_0 = arith.constant 0 : index
    %c0_1 = arith.constant 0 : index
    %0 = vector.load %arg1[%c0, %c0_0, %c0_1] : memref<1x8x256xf32, #tpu.memory_space<vmem>>, vector<1x8x256xf32>
    %1 = vector.shape_cast %0 : vector<1x8x256xf32> to vector<8x256xf32>
    %2 = vector.extract_strided_slice %1 {offsets = [0, 1], sizes = [8, 255], strides = [1, 1]} : vector<8x256xf32> to vector<8x255xf32>
    %3 = vector.extract_strided_slice %1 {offsets = [0, 0], sizes = [8, 1], strides = [1, 1]} : vector<8x256xf32> to vector<8x1xf32>
    %4 = tpu.concatenate %2, %3 in 1 : vector<8x255xf32>, vector<8x1xf32> -> vector<8x256xf32>
    %5 = vector.extract_strided_slice %1 {offsets = [0, 2], sizes = [8, 254], strides = [1, 1]} : vector<8x256xf32> to vector<8x254xf32>
    %6 = vector.extract_strided_slice %1 {offsets = [0, 0], sizes = [8, 2], strides = [1, 1]} : vector<8x256xf32> to vector<8x2xf32>
    %7 = tpu.concatenate %5, %6 in 1 : vector<8x254xf32>, vector<8x2xf32> -> vector<8x256xf32>
    %8 = vector.extract_strided_slice %1 {offsets = [0, 16], sizes = [8, 240], strides = [1, 1]} : vector<8x256xf32> to vector<8x240xf32>
    %9 = vector.extract_strided_slice %1 {offsets = [0, 0], sizes = [8, 16], strides = [1, 1]} : vector<8x256xf32> to vector<8x16xf32>
    %10 = tpu.concatenate %8, %9 in 1 : vector<8x240xf32>, vector<8x16xf32> -> vector<8x256xf32>
    %11 = vector.extract_strided_slice %1 {offsets = [0, 17], sizes = [8, 239], strides = [1, 1]} : vector<8x256xf32> to vector<8x239xf32>
    %12 = vector.extract_strided_slice %1 {offsets = [0, 0], sizes = [8, 17], strides = [1, 1]} : vector<8x256xf32> to vector<8x17xf32>
    %13 = tpu.concatenate %11, %12 in 1 : vector<8x239xf32>, vector<8x17xf32> -> vector<8x256xf32>
    %14 = vector.extract_strided_slice %1 {offsets = [0, 18], sizes = [8, 238], strides = [1, 1]} : vector<8x256xf32> to vector<8x238xf32>
    %15 = vector.extract_strided_slice %1 {offsets = [0, 0], sizes = [8, 18], strides = [1, 1]} : vector<8x256xf32> to vector<8x18xf32>
    %16 = tpu.concatenate %14, %15 in 1 : vector<8x238xf32>, vector<8x18xf32> -> vector<8x256xf32>
    %17 = vector.extract_strided_slice %1 {offsets = [0, 32], sizes = [8, 224], strides = [1, 1]} : vector<8x256xf32> to vector<8x224xf32>
    %18 = vector.extract_strided_slice %1 {offsets = [0, 0], sizes = [8, 32], strides = [1, 1]} : vector<8x256xf32> to vector<8x32xf32>
    %19 = tpu.concatenate %17, %18 in 1 : vector<8x224xf32>, vector<8x32xf32> -> vector<8x256xf32>
    %20 = vector.extract_strided_slice %1 {offsets = [0, 33], sizes = [8, 223], strides = [1, 1]} : vector<8x256xf32> to vector<8x223xf32>
    %21 = vector.extract_strided_slice %1 {offsets = [0, 0], sizes = [8, 33], strides = [1, 1]} : vector<8x256xf32> to vector<8x33xf32>
    %22 = tpu.concatenate %20, %21 in 1 : vector<8x223xf32>, vector<8x33xf32> -> vector<8x256xf32>
    %23 = vector.extract_strided_slice %1 {offsets = [0, 34], sizes = [8, 222], strides = [1, 1]} : vector<8x256xf32> to vector<8x222xf32>
    %24 = vector.extract_strided_slice %1 {offsets = [0, 0], sizes = [8, 34], strides = [1, 1]} : vector<8x256xf32> to vector<8x34xf32>
    %25 = tpu.concatenate %23, %24 in 1 : vector<8x222xf32>, vector<8x34xf32> -> vector<8x256xf32>
    %26 = tpu.concatenate %1, %4, %7, %10, %13, %16, %19, %22, %25 in 0 : vector<8x256xf32>, vector<8x256xf32>, vector<8x256xf32>, vector<8x256xf32>, vector<8x256xf32>, vector<8x256xf32>, vector<8x256xf32>, vector<8x256xf32>, vector<8x256xf32> -> vector<72x256xf32>
    %c0_2 = arith.constant 0 : index
    %c0_3 = arith.constant 0 : index
    %27 = vector.load %arg2[%c0_2, %c0_3] : memref<8x72xf32, #tpu.memory_space<vmem>>, vector<8x72xf32>
    %cst = arith.constant dense<0.000000e+00> : vector<8x256xf32>
    %28 = tpu.matmul %27, %26, %cst {dimension_numbers = #tpu.dot_dimension_numbers<[1], [0], [0], [1], [0, 0, 1, 1], [], []>} : vector<8x72xf32>, vector<72x256xf32>, vector<8x256xf32> -> vector<8x256xf32>
    %c0_4 = arith.constant 0 : index
    %c0_5 = arith.constant 0 : index
    %29 = vector.load %arg3[%c0_4, %c0_5] : memref<8x1xf32, #tpu.memory_space<vmem>>, vector<8x1xf32>
    %30 = vector.broadcast %29 : vector<8x1xf32> to vector<8x256xf32>
    %31 = arith.addf %28, %30 : vector<8x256xf32>
    %cst_6 = arith.constant 0.000000e+00 : f32
    %32 = vector.broadcast %cst_6 : f32 to vector<8x256xf32>
    %33 = arith.maximumf %31, %32 : vector<8x256xf32>
    %34 = vector.extract_strided_slice %33 {offsets = [0, 1], sizes = [8, 255], strides = [1, 1]} : vector<8x256xf32> to vector<8x255xf32>
    %35 = vector.extract_strided_slice %33 {offsets = [0, 0], sizes = [8, 1], strides = [1, 1]} : vector<8x256xf32> to vector<8x1xf32>
    %36 = tpu.concatenate %34, %35 in 1 : vector<8x255xf32>, vector<8x1xf32> -> vector<8x256xf32>
    %37 = vector.extract_strided_slice %33 {offsets = [0, 2], sizes = [8, 254], strides = [1, 1]} : vector<8x256xf32> to vector<8x254xf32>
    %38 = vector.extract_strided_slice %33 {offsets = [0, 0], sizes = [8, 2], strides = [1, 1]} : vector<8x256xf32> to vector<8x2xf32>
    %39 = tpu.concatenate %37, %38 in 1 : vector<8x254xf32>, vector<8x2xf32> -> vector<8x256xf32>
    %40 = vector.extract_strided_slice %33 {offsets = [0, 16], sizes = [8, 240], strides = [1, 1]} : vector<8x256xf32> to vector<8x240xf32>
    %41 = vector.extract_strided_slice %33 {offsets = [0, 0], sizes = [8, 16], strides = [1, 1]} : vector<8x256xf32> to vector<8x16xf32>
    %42 = tpu.concatenate %40, %41 in 1 : vector<8x240xf32>, vector<8x16xf32> -> vector<8x256xf32>
    %43 = vector.extract_strided_slice %33 {offsets = [0, 17], sizes = [8, 239], strides = [1, 1]} : vector<8x256xf32> to vector<8x239xf32>
    %44 = vector.extract_strided_slice %33 {offsets = [0, 0], sizes = [8, 17], strides = [1, 1]} : vector<8x256xf32> to vector<8x17xf32>
    %45 = tpu.concatenate %43, %44 in 1 : vector<8x239xf32>, vector<8x17xf32> -> vector<8x256xf32>
    %46 = vector.extract_strided_slice %33 {offsets = [0, 18], sizes = [8, 238], strides = [1, 1]} : vector<8x256xf32> to vector<8x238xf32>
    %47 = vector.extract_strided_slice %33 {offsets = [0, 0], sizes = [8, 18], strides = [1, 1]} : vector<8x256xf32> to vector<8x18xf32>
    %48 = tpu.concatenate %46, %47 in 1 : vector<8x238xf32>, vector<8x18xf32> -> vector<8x256xf32>
    %49 = vector.extract_strided_slice %33 {offsets = [0, 32], sizes = [8, 224], strides = [1, 1]} : vector<8x256xf32> to vector<8x224xf32>
    %50 = vector.extract_strided_slice %33 {offsets = [0, 0], sizes = [8, 32], strides = [1, 1]} : vector<8x256xf32> to vector<8x32xf32>
    %51 = tpu.concatenate %49, %50 in 1 : vector<8x224xf32>, vector<8x32xf32> -> vector<8x256xf32>
    %52 = vector.extract_strided_slice %33 {offsets = [0, 33], sizes = [8, 223], strides = [1, 1]} : vector<8x256xf32> to vector<8x223xf32>
    %53 = vector.extract_strided_slice %33 {offsets = [0, 0], sizes = [8, 33], strides = [1, 1]} : vector<8x256xf32> to vector<8x33xf32>
    %54 = tpu.concatenate %52, %53 in 1 : vector<8x223xf32>, vector<8x33xf32> -> vector<8x256xf32>
    %55 = vector.extract_strided_slice %33 {offsets = [0, 34], sizes = [8, 222], strides = [1, 1]} : vector<8x256xf32> to vector<8x222xf32>
    %56 = vector.extract_strided_slice %33 {offsets = [0, 0], sizes = [8, 34], strides = [1, 1]} : vector<8x256xf32> to vector<8x34xf32>
    %57 = tpu.concatenate %55, %56 in 1 : vector<8x222xf32>, vector<8x34xf32> -> vector<8x256xf32>
    %58 = tpu.concatenate %33, %36, %39, %42, %45, %48, %51, %54, %57 in 0 : vector<8x256xf32>, vector<8x256xf32>, vector<8x256xf32>, vector<8x256xf32>, vector<8x256xf32>, vector<8x256xf32>, vector<8x256xf32>, vector<8x256xf32>, vector<8x256xf32> -> vector<72x256xf32>
    %c0_7 = arith.constant 0 : index
    %c0_8 = arith.constant 0 : index
    %59 = vector.load %arg4[%c0_7, %c0_8] : memref<8x72xf32, #tpu.memory_space<vmem>>, vector<8x72xf32>
    %cst_9 = arith.constant dense<0.000000e+00> : vector<8x256xf32>
    %60 = tpu.matmul %59, %58, %cst_9 {dimension_numbers = #tpu.dot_dimension_numbers<[1], [0], [0], [1], [0, 0, 1, 1], [], []>} : vector<8x72xf32>, vector<72x256xf32>, vector<8x256xf32> -> vector<8x256xf32>
    %c0_10 = arith.constant 0 : index
    %c0_11 = arith.constant 0 : index
    %61 = vector.load %arg5[%c0_10, %c0_11] : memref<8x1xf32, #tpu.memory_space<vmem>>, vector<8x1xf32>
    %62 = vector.broadcast %61 : vector<8x1xf32> to vector<8x256xf32>
    %63 = arith.addf %60, %62 : vector<8x256xf32>
    %c0_12 = arith.constant 0 : index
    %c0_13 = arith.constant 0 : index
    %c0_14 = arith.constant 0 : index
    %64 = vector.load %arg6[%c0_12, %c0_13, %c0_14] : memref<1x8x256xf32, #tpu.memory_space<vmem>>, vector<1x8x256xf32>
    %65 = vector.shape_cast %64 : vector<1x8x256xf32> to vector<8x256xf32>
    %66 = vector.shape_cast %63 : vector<8x256xf32> to vector<1x8x256xf32>
    tpu.vector_store %arg6[%c0_12, %c0_13, %c0_14], %66 {strides = array<i32>} : memref<1x8x256xf32, #tpu.memory_space<vmem>>, vector<1x8x256xf32>,
    return
  }
  func.func @transform_0(%arg0: i32) -> (i32, i32, i32) {
    %c0_i32 = arith.constant 0 : i32
    %c0_i32_0 = arith.constant 0 : i32
    %c0_i32_1 = arith.constant 0 : i32
    return %arg0, %c0_i32, %c0_i32_0 : i32, i32, i32
  }
  func.func @transform_1(%arg0: i32) -> (i32, i32) {
    %c0_i32 = arith.constant 0 : i32
    %c0_i32_0 = arith.constant 0 : i32
    %c0_i32_1 = arith.constant 0 : i32
    return %c0_i32, %c0_i32_0 : i32, i32
  }
  func.func @transform_2(%arg0: i32) -> (i32, i32) {
    %c0_i32 = arith.constant 0 : i32
    %c0_i32_0 = arith.constant 0 : i32
    %c0_i32_1 = arith.constant 0 : i32
    return %c0_i32, %c0_i32_0 : i32, i32
  }
  func.func @transform_3(%arg0: i32) -> (i32, i32) {
    %c0_i32 = arith.constant 0 : i32
    %c0_i32_0 = arith.constant 0 : i32
    %c0_i32_1 = arith.constant 0 : i32
    return %c0_i32, %c0_i32_0 : i32, i32
  }
  func.func @transform_4(%arg0: i32) -> (i32, i32) {
    %c0_i32 = arith.constant 0 : i32
    %c0_i32_0 = arith.constant 0 : i32
    %c0_i32_1 = arith.constant 0 : i32
    return %c0_i32, %c0_i32_0 : i32, i32
  }
  func.func @transform_5(%arg0: i32) -> (i32, i32, i32) {
    %c0_i32 = arith.constant 0 : i32
    %c0_i32_0 = arith.constant 0 : i32
    %c0_i32_1 = arith.constant 0 : i32
    return %arg0, %c0_i32, %c0_i32_0 : i32, i32, i32
  }
}

</mosaic_0001>

<llo_original>
// kernel: tpu_custom_call.1
$region0: #{tpu_custom_call.1}
  #allocation0 [shape = 'u32[]', space=smem, size = 0x4, offset = 0x4, fixed_abs, tag = 'smem constant byte address 0x4 - core index']
  #allocation1 [shape = 'u32[144,128]{1,0:T(1,128)}', space=vmem, size = 0x12000, scoped, tag = 'internal scratch']
  %s0 = inlined_call_operand.hbm [shape: f32[2,8,256], index: 0, kind: input, shape index: {}]
  %s1 = inlined_call_operand.vmem [shape: f32[8,72], index: 1, kind: input, shape index: {}]
  %s2 = inlined_call_operand.vmem [shape: f32[8,1], index: 2, kind: input, shape index: {}]
  %s3 = inlined_call_operand.vmem [shape: f32[8,72], index: 3, kind: input, shape index: {}]
  %s4 = inlined_call_operand.vmem [shape: f32[8,1], index: 4, kind: input, shape index: {}]
  %s5 = inlined_call_operand.hbm [shape: f32[2,8,256], index: 5, kind: output, shape index: {}]
  %s6 = sld [smem:[#allocation0]]
  $region57: #{tpu_custom_call.1} parent=0
    _
  %s8 = ssub.s32 1, %s6
  %s9 = scalar_select 0, %s8, %s6
  $region1: #{tpu_custom_call.1} parent=0
    #allocation2 [shape = 'u8[16384]{0}', space=vmem, size = 0x4000, scoped, tag = 'input window, operand 0']
    #allocation3 [shape = 's32[2]{0}', space=sflag, size = 0x8, scoped, tag = 'scoped memory for tpu_custom_call.1']
    #allocation4 [shape = 's32[2]{0}', space=sflag, size = 0x8, scoped, tag = 'scoped memory for tpu_custom_call.1']
    #allocation5 [shape = 'u8[16384]{0}', space=vmem, size = 0x4000, scoped, tag = 'output window, operand 0']
    %10 = vsyncpa [#allocation3], 0
    %s11 = scalar_lea.sflag [#allocation3], 1
    %12 = vsyncpa %s11, 0
    %13 = vsyncpa [#allocation4], 0
    %s14 = scalar_lea.sflag [#allocation4], 1
    %15 = vsyncpa %s14, 0
    loop: start=0, step=1, limit=4
    $region2: #{tpu_custom_call.1} parent=1 // loop_pre_header
      _
    $region3: #{tpu_custom_call.1} parent=1 // loop_header
      %s17 = sphi 0, %s21
      %p18 = scmp.ge.s32.totalorder %s17, 4
      %s27 = sphi 0, %s29
      %s30 = sphi 0, %s27
      %s31 = sphi 0, %s30
      %s47 = sphi 0, %s31
      %s51 = sphi 0, %s51
      %s53 = sphi 0, %s51
      %s54 = sphi 0, %s53
      %s68 = sphi 0, %s54
      %s72 = sphi 0, %s72
      %s74 = sphi 0, %s72
      %s75 = sphi 0, %s74
      %s89 = sphi 0, %s75
      %s93 = sphi 0, %s93
      %s95 = sphi 0, %s93
      %s96 = sphi 0, %s95
      %s110 = sphi 0, %s96
      %s114 = sphi 0, %s114
      %s116 = sphi 0, %s114
      %s117 = sphi 0, %s116
      %s131 = sphi 0, %s117
      %s137 = sphi 0, %s139
      %s140 = sphi 0, %s137
      %s141 = sphi 0, %s140
      %s157 = sphi 0, %s141
    $region4: #{tpu_custom_call.1} parent=1 // loop_header_branch
      %20 = sbr.rel (%p18) target = $region8
    $region5: #{tpu_custom_call.1} parent=1 // loop_body
      %s22 = ssub.s32 %s17, 1
      %s23 = ssub.s32 %s17, 2
      %s24 = sadd.s32 %s17, 1
      %s25 = ssub.s32 %s17, %s24
      %p26 = scmp.eq.s32.totalorder %s25, 0
      %s28 = sadd.s32 %s27, 1
      %s29 = scalar_select %p26, %s27, %s28
      %p32 = pneg %p26
      %p33 = scmp.eq.s32.totalorder %s17, 1
      %p34 = por %p32, %p33
      %p35 = scmp.ne.s32.totalorder %s27, %s30
      %p36 = scmp.eq.s32.totalorder %s17, 0
      %p37 = por %p35, %p36
      %p38 = scmp.ne.s32.totalorder %s27, %s30
      %p39 = scmp.eq.s32.totalorder %s22, 1
      %p40 = por %p38, %p39
      %p41 = scmp.ne.s32.totalorder %s30, %s31
      %p42 = scmp.eq.s32.totalorder %s22, 0
      %p43 = por %p41, %p42
      %p44 = scmp.ne.s32.totalorder %s30, %s31
      %p45 = scmp.eq.s32.totalorder %s23, 1
      %p46 = por %p44, %p45
      %p48 = scmp.ne.s32.totalorder %s31, %s47
      %p49 = scmp.eq.s32.totalorder %s23, 0
      %p50 = por %p48, %p49
      %s52 = sadd.s32 %s51, 1
      %p55 = scmp.eq.s32.totalorder %s17, 1
      %p56 = scmp.ne.s32.totalorder %s51, %s53
      %p57 = scmp.eq.s32.totalorder %s17, 0
      %p58 = por %p56, %p57
      %p59 = scmp.ne.s32.totalorder %s51, %s53
      %p60 = scmp.eq.s32.totalorder %s22, 1
      %p61 = por %p59, %p60
      %p62 = scmp.ne.s32.totalorder %s53, %s54
      %p63 = scmp.eq.s32.totalorder %s22, 0
      %p64 = por %p62, %p63
      %p65 = scmp.ne.s32.totalorder %s53, %s54
      %p66 = scmp.eq.s32.totalorder %s23, 1
      %p67 = por %p65, %p66
      %p69 = scmp.ne.s32.totalorder %s54, %s68
      %p70 = scmp.eq.s32.totalorder %s23, 0
      %p71 = por %p69, %p70
      %s73 = sadd.s32 %s72, 1
      %p76 = scmp.eq.s32.totalorder %s17, 1
      %p77 = scmp.ne.s32.totalorder %s72, %s74
      %p78 = scmp.eq.s32.totalorder %s17, 0
      %p79 = por %p77, %p78
      %p80 = scmp.ne.s32.totalorder %s72, %s74
      %p81 = scmp.eq.s32.totalorder %s22, 1
      %p82 = por %p80, %p81
      %p83 = scmp.ne.s32.totalorder %s74, %s75
      %p84 = scmp.eq.s32.totalorder %s22, 0
      %p85 = por %p83, %p84
      %p86 = scmp.ne.s32.totalorder %s74, %s75
      %p87 = scmp.eq.s32.totalorder %s23, 1
      %p88 = por %p86, %p87
      %p90 = scmp.ne.s32.totalorder %s75, %s89
      %p91 = scmp.eq.s32.totalorder %s23, 0
      %p92 = por %p90, %p91
      %s94 = sadd.s32 %s93, 1
      %p97 = scmp.eq.s32.totalorder %s17, 1
      %p98 = scmp.ne.s32.totalorder %s93, %s95
      %p99 = scmp.eq.s32.totalorder %s17, 0
      %p100 = por %p98, %p99
      %p101 = scmp.ne.s32.totalorder %s93, %s95
      %p102 = scmp.eq.s32.totalorder %s22, 1
      %p103 = por %p101, %p102
      %p104 = scmp.ne.s32.totalorder %s95, %s96
      %p105 = scmp.eq.s32.totalorder %s22, 0
      %p106 = por %p104, %p105
      %p107 = scmp.ne.s32.totalorder %s95, %s96
      %p108 = scmp.eq.s32.totalorder %s23, 1
      %p109 = por %p107, %p108
      %p111 = scmp.ne.s32.totalorder %s96, %s110
      %p112 = scmp.eq.s32.totalorder %s23, 0
      %p113 = por %p111, %p112
      %s115 = sadd.s32 %s114, 1
      %p118 = scmp.eq.s32.totalorder %s17, 1
      %p119 = scmp.ne.s32.totalorder %s114, %s116
      %p120 = scmp.eq.s32.totalorder %s17, 0
      %p121 = por %p119, %p120
      %p122 = scmp.ne.s32.totalorder %s114, %s116
      %p123 = scmp.eq.s32.totalorder %s22, 1
      %p124 = por %p122, %p123
      %p125 = scmp.ne.s32.totalorder %s116, %s117
      %p126 = scmp.eq.s32.totalorder %s22, 0
      %p127 = por %p125, %p126
      %p128 = scmp.ne.s32.totalorder %s116, %s117
      %p129 = scmp.eq.s32.totalorder %s23, 1
      %p130 = por %p128, %p129
      %p132 = scmp.ne.s32.totalorder %s117, %s131
      %p133 = scmp.eq.s32.totalorder %s23, 0
      %p134 = por %p132, %p133
      %s135 = ssub.s32 %s17, %s24
      %p136 = scmp.eq.s32.totalorder %s135, 0
      %s138 = sadd.s32 %s137, 1
      %s139 = scalar_select %p136, %s137, %s138
      %p142 = pneg %p136
      %p143 = scmp.eq.s32.totalorder %s17, 1
      %p144 = por %p142, %p143
      %p145 = scmp.ne.s32.totalorder %s137, %s140
      %p146 = scmp.eq.s32.totalorder %s17, 0
      %p147 = por %p145, %p146
      %p148 = scmp.ne.s32.totalorder %s137, %s140
      %p149 = scmp.eq.s32.totalorder %s22, 1
      %p150 = por %p148, %p149
      %p151 = scmp.ne.s32.totalorder %s140, %s141
      %p152 = scmp.eq.s32.totalorder %s22, 0
      %p153 = por %p151, %p152
      %p154 = scmp.ne.s32.totalorder %s140, %s141
      %p155 = scmp.eq.s32.totalorder %s23, 1
      %p156 = por %p154, %p155
      %p158 = scmp.ne.s32.totalorder %s141, %s157
      %p159 = scmp.eq.s32.totalorder %s23, 0
      %p160 = por %p158, %p159
      %p161 = scmp.le.s32.totalorder 1, %s17
      %p162 = scmp.lt.s32.totalorder %s17, 3
      %p163 = pnand %p161, %p162
      %p164 = pneg %p163
      // Predicated region
      $region9: #{tpu_custom_call.1} parent=5 // pred_check
        _
      $region10: #{tpu_custom_call.1} parent=5 // pred_check_branch
        %166 = sbr.rel (%p163) target = $region12
      $region11: #{tpu_custom_call.1} parent=5 // pred_region
        %s167 = ssub.s32 %s17, 1
        // Predicated region
        $region13: #{tpu_custom_call.1} parent=11 // pred_check
          %p168 = pneg %p64
        $region14: #{tpu_custom_call.1} parent=11 // pred_check_branch
          %170 = sbr.rel (%p168) target = $region16
        $region15: #{tpu_custom_call.1} parent=11 // pred_region
          _
        $region16: #{tpu_custom_call.1} parent=11 // pred_fallthru
          _
        // Predicated region
        $region17: #{tpu_custom_call.1} parent=11 // pred_check
          %p171 = pneg %p85
        $region18: #{tpu_custom_call.1} parent=11 // pred_check_branch
          %173 = sbr.rel (%p171) target = $region20
        $region19: #{tpu_custom_call.1} parent=11 // pred_region
          _
        $region20: #{tpu_custom_call.1} parent=11 // pred_fallthru
          _
        // Predicated region
        $region21: #{tpu_custom_call.1} parent=11 // pred_check
          %p174 = pneg %p106
        $region22: #{tpu_custom_call.1} parent=11 // pred_check_branch
          %176 = sbr.rel (%p174) target = $region24
        $region23: #{tpu_custom_call.1} parent=11 // pred_region
          _
        $region24: #{tpu_custom_call.1} parent=11 // pred_fallthru
          _
        // Predicated region
        $region25: #{tpu_custom_call.1} parent=11 // pred_check
          %p177 = pneg %p127
        $region26: #{tpu_custom_call.1} parent=11 // pred_check_branch
          %179 = sbr.rel (%p177) target = $region28
        $region27: #{tpu_custom_call.1} parent=11 // pred_region
          _
        $region28: #{tpu_custom_call.1} parent=11 // pred_fallthru
          _
      $region12: #{tpu_custom_call.1} parent=5 // pred_fallthru
        _
      %p180 = scmp.lt.s32.totalorder %s17, 2
      // Predicated region
      $region29: #{tpu_custom_call.1} parent=5 // pred_check
        %p181 = pneg %p180
      $region30: #{tpu_custom_call.1} parent=5 // pred_check_branch
        %183 = sbr.rel (%p181) target = $region32
      $region31: #{tpu_custom_call.1} parent=5 // pred_region
        // Predicated region
        $region33: #{tpu_custom_call.1} parent=31 // pred_check
          %p184 = pneg %p37
        $region34: #{tpu_custom_call.1} parent=31 // pred_check_branch
          %186 = sbr.rel (%p184) target = $region36
        $region35: #{tpu_custom_call.1} parent=31 // pred_region
          %s187 = sand.u32 %s27, 1
          %s188 = scalar_lea.sflag [#allocation3], %s187
          %s189 = sand.u32 %s27, 1
          %s190 = smul.addr %s189, 16
          %s191 = scalar_lea.vmem [#allocation2], %s190
          %s193 = ssub.s32 256, 256
          %194 = vsyncadd %s188, %s193
          %s195 = smul.addr %s17, 2
          %s196 = smul.addr %s195, 128
          %s197 = scalar_lea.hbm %s0, %s196
          %s199 = sshll.u32 %s191, 4
          %s200 = int_to_ptr.vmem [resolvable:$true] %s199
          %202 = dma.hbm_to_vmem [thread:$0]  %s197, 256, %s200, %s188
        $region36: #{tpu_custom_call.1} parent=31 // pred_fallthru
          _
      $region32: #{tpu_custom_call.1} parent=5 // pred_fallthru
        _
      %p203 = scmp.le.s32.totalorder 1, %s17
      %p204 = scmp.lt.s32.totalorder %s17, 3
      %p205 = pnand %p203, %p204
      %p206 = pneg %p205
      // Predicated region
      $region37: #{tpu_custom_call.1} parent=5 // pred_check
        _
      $region38: #{tpu_custom_call.1} parent=5 // pred_check_branch
        %208 = sbr.rel (%p205) target = $region40
      $region39: #{tpu_custom_call.1} parent=5 // pred_region
        %s209 = ssub.s32 %s17, 1
        %s210 = sand.u32 %s30, 1
        %s211 = scalar_lea.sflag [#allocation3], %s210
        %s212 = sand.u32 %s30, 1
        %s213 = smul.addr %s212, 16
        %s214 = scalar_lea.vmem [#allocation2], %s213
        // Predicated region
        $region41: #{tpu_custom_call.1} parent=39 // pred_check
          %p215 = pneg %p43
        $region42: #{tpu_custom_call.1} parent=39 // pred_check_branch
          %217 = sbr.rel (%p215) target = $region44
        $region43: #{tpu_custom_call.1} parent=39 // pred_region
          %218 = dma.done %s211, 256
        $region44: #{tpu_custom_call.1} parent=39 // pred_fallthru
          _
        %s219 = sand.u32 %s30, 1
        %s220 = scalar_lea.sflag [#allocation3], %s219
        %s221 = sand.u32 %s30, 1
        %s222 = smul.addr %s221, 16
        %s223 = scalar_lea.vmem [#allocation2], %s222
        %p224 = pneg %p43
        %p225 = pneg %p40
        %p226 = pneg %p64
        %p227 = pneg %p61
        %p228 = pneg %p85
        %p229 = pneg %p82
        %p230 = pneg %p106
        %p231 = pneg %p103
        %p232 = pneg %p127
        %p233 = pneg %p124
        %p234 = pneg %p153
        %p235 = pneg %p150
        %s236 = sand.u32 %s140, 1
        %s237 = scalar_lea.sflag [#allocation4], %s236
        %s238 = sand.u32 %s140, 1
        %s239 = smul.addr %s238, 16
        %s240 = scalar_lea.vmem [#allocation5], %s239
        %v241 = vld [vmem:[%s214] sm:$0xff]
        %v242 = vld [vmem:[%s214 + $0x8] sm:$0xff]
        %245 = vrot.lane.b32.xlu0 %v241, 127
        %v246 = vpop.permute.xlu0 %245
        %247 = vrot.lane.b32.xlu0 %v242, 127
        %v248 = vpop.permute.xlu0 %247
        %vm249 = vcmask 1039360
        %v250 = vsel %vm249, %v246, %v248
        %v254 = vsel %vm249, %v248, %v246
        %255 = vrot.lane.b32.xlu0 %v241, 126
        %v256 = vpop.permute.xlu0 %255
        %257 = vrot.lane.b32.xlu0 %v242, 126
        %v258 = vpop.permute.xlu0 %257
        %vm259 = vcmask 1031168
        %v260 = vsel %vm259, %v256, %v258
        %v264 = vsel %vm259, %v258, %v256
        %265 = vrot.lane.b32.xlu0 %v241, 112
        %v266 = vpop.permute.xlu0 %265
        %267 = vrot.lane.b32.xlu0 %v242, 112
        %v268 = vpop.permute.xlu0 %267
        %vm269 = vcmask 916480
        %v270 = vsel %vm269, %v266, %v268
        %v274 = vsel %vm269, %v268, %v266
        %275 = vrot.lane.b32.xlu0 %v241, 111
        %v276 = vpop.permute.xlu0 %275
        %277 = vrot.lane.b32.xlu0 %v242, 111
        %v278 = vpop.permute.xlu0 %277
        %vm279 = vcmask 908288
        %v280 = vsel %vm279, %v276, %v278
        %v284 = vsel %vm279, %v278, %v276
        %285 = vrot.lane.b32.xlu0 %v241, 110
        %v286 = vpop.permute.xlu0 %285
        %287 = vrot.lane.b32.xlu0 %v242, 110
        %v288 = vpop.permute.xlu0 %287
        %vm289 = vcmask 900096
        %v290 = vsel %vm289, %v286, %v288
        %v294 = vsel %vm289, %v288, %v286
        %295 = vrot.lane.b32.xlu0 %v241, 96
        %v296 = vpop.permute.xlu0 %295
        %297 = vrot.lane.b32.xlu0 %v242, 96
        %v298 = vpop.permute.xlu0 %297
        %vm299 = vcmask 785408
        %v300 = vsel %vm299, %v296, %v298
        %v304 = vsel %vm299, %v298, %v296
        %305 = vrot.lane.b32.xlu0 %v241, 95
        %v306 = vpop.permute.xlu0 %305
        %307 = vrot.lane.b32.xlu0 %v242, 95
        %v308 = vpop.permute.xlu0 %307
        %vm309 = vcmask 777216
        %v310 = vsel %vm309, %v306, %v308
        %v314 = vsel %vm309, %v308, %v306
        %315 = vrot.lane.b32.xlu0 %v241, 94
        %v316 = vpop.permute.xlu0 %315
        %317 = vrot.lane.b32.xlu0 %v242, 94
        %v318 = vpop.permute.xlu0 %317
        %vm319 = vcmask 769024
        %v320 = vsel %vm319, %v316, %v318
        %v324 = vsel %vm319, %v318, %v316
        %v325 = vld [vmem:[%s1] sm:$0xff]
        %v326 = vld [vmem:[%s2] sm:$0xff]
        %328 = vset.pattern.permute.xlu0 0
        %329 = vperm.xlu0 %328, %v326
        %v330 = vpop.permute.xlu0 %329
        %vm332 = vcmask 588800
        %v334 = vsel %vm332, %v325, 0
        %336 = vmatprep.subr.mxu0 %v242
        %337 = vmatpush1.msra.mxu0 %v241
        %338 = vmatprep.subr.mxu0 %v254
        %339 = vmatpush1.msra.mxu0 %v250
        %340 = vmatprep.subr.mxu0 %v264
        %341 = vmatpush1.msra.mxu0 %v260
        %342 = vmatprep.subr.mxu0 %v274
        %343 = vmatpush1.msra.mxu0 %v270
        %344 = vmatprep.subr.mxu0 %v284
        %345 = vmatpush1.msra.mxu0 %v280
        %346 = vmatprep.subr.mxu0 %v294
        %347 = vmatpush1.msra.mxu0 %v290
        %348 = vmatprep.subr.mxu0 %v304
        %349 = vmatpush1.msra.mxu0 %v300
        %350 = vmatprep.subr.mxu0 %v314
        %351 = vmatpush1.msra.mxu0 %v310
        %352 = vmatprep.subr.mxu0 %v324
        %353 = vmatpush1.msra.mxu0 %v320
        %354 = vmatprep.subr.mxu0 0.0
        %355 = vmatpush1.msra.mxu0 0.0
        %356 = vmatprep.subr.mxu0 0.0
        %357 = vmatpush1.msra.mxu0 0.0
        %358 = vmatprep.subr.mxu0 0.0
        %359 = vmatpush1.msra.mxu0 0.0
        %360 = vmatprep.subr.mxu0 0.0
        %361 = vmatpush1.msra.mxu0 0.0
        %362 = vmatprep.subr.mxu0 0.0
        %363 = vmatpush1.msra.mxu0 0.0
        %364 = vmatprep.subr.mxu0 0.0
        %365 = vmatpush1.msra.mxu0 0.0
        %366 = vmatprep.subr.mxu0 0.0
        %367 = vmatpush1.msra.mxu0 0.0
        %368 = vmatprep.subr.mxu0 0.0
        %369 = vmatpush1.msra.mxu0 0.0
        %370 = vmatprep.subr.mxu0 0.0
        %371 = vmatpush1.msra.mxu0 0.0
        %372 = vmatprep.subr.mxu0 0.0
        %373 = vmatpush1.msra.mxu0 0.0
        %374 = vmatprep.subr.mxu0 0.0
        %375 = vmatpush1.msra.mxu0 0.0
        %376 = vmatprep.subr.mxu0 0.0
        %377 = vmatpush1.msra.mxu0 0.0
        %378 = vmatprep.subr.mxu0 0.0
        %379 = vmatpush1.msra.mxu0 0.0
        %380 = vmatprep.subr.mxu0 0.0
        %381 = vmatpush1.msra.mxu0 0.0
        %382 = vmatprep.subr.mxu0 0.0
        %383 = vmatpush1.msra.mxu0 0.0
        %384 = vmatprep.subr.mxu0 0.0
        %385 = vmatpush1.msra.mxu0 0.0
        %386 = vmatprep.subr.mxu0 0.0
        %387 = vmatpush1.msra.mxu0 0.0
        %388 = vmatprep.subr.mxu0 0.0
        %389 = vmatpush1.msra.mxu0 0.0
        %390 = vmatprep.subr.mxu0 0.0
        %391 = vmatpush1.msra.mxu0 0.0
        %392 = vmatprep.subr.mxu0 0.0
        %393 = vmatpush1.msra.mxu0 0.0
        %394 = vmatprep.subr.mxu0 0.0
        %395 = vmatpush1.msra.mxu0 0.0
        %396 = vmatprep.subr.mxu0 0.0
        %397 = vmatpush1.msra.mxu0 0.0
        %398 = vmatprep.subr.mxu0 0.0
        %399 = vmatpush1.msra.mxu0 0.0
        %400 = vmatprep.mubr.f32.mxu0 0.0
        %401 = vmatmul.mubr.f32.gmra.mrb[0].mxu0 %v334
        %v402 = vpop.f32.mrb[0].mxu0
        %v403 = vadd.f32 %v330, %v402
        %v404 = vpop.f32.mrb[0].mxu0
        %v405 = vadd.f32 %v330, %v404
        %406 = vdwg.mxu0
        %v407 = vmax.f32 %v403, 0.0
        %v408 = vmax.f32 %v405, 0.0
        %411 = vrot.lane.b32.xlu0 %v407, 127
        %v412 = vpop.permute.xlu0 %411
        %413 = vrot.lane.b32.xlu0 %v408, 127
        %v414 = vpop.permute.xlu0 %413
        %v415 = vsel %vm249, %v412, %v414
        %v419 = vsel %vm249, %v414, %v412
        %420 = vrot.lane.b32.xlu0 %v407, 126
        %v421 = vpop.permute.xlu0 %420
        %422 = vrot.lane.b32.xlu0 %v408, 126
        %v423 = vpop.permute.xlu0 %422
        %v424 = vsel %vm259, %v421, %v423
        %v428 = vsel %vm259, %v423, %v421
        %429 = vrot.lane.b32.xlu0 %v407, 112
        %v430 = vpop.permute.xlu0 %429
        %431 = vrot.lane.b32.xlu0 %v408, 112
        %v432 = vpop.permute.xlu0 %431
        %v433 = vsel %vm269, %v430, %v432
        %v437 = vsel %vm269, %v432, %v430
        %438 = vrot.lane.b32.xlu0 %v407, 111
        %v439 = vpop.permute.xlu0 %438
        %440 = vrot.lane.b32.xlu0 %v408, 111
        %v441 = vpop.permute.xlu0 %440
        %v442 = vsel %vm279, %v439, %v441
        %v446 = vsel %vm279, %v441, %v439
        %447 = vrot.lane.b32.xlu0 %v407, 110
        %v448 = vpop.permute.xlu0 %447
        %449 = vrot.lane.b32.xlu0 %v408, 110
        %v450 = vpop.permute.xlu0 %449
        %v451 = vsel %vm289, %v448, %v450
        %v455 = vsel %vm289, %v450, %v448
        %456 = vrot.lane.b32.xlu0 %v407, 96
        %v457 = vpop.permute.xlu0 %456
        %458 = vrot.lane.b32.xlu0 %v408, 96
        %v459 = vpop.permute.xlu0 %458
        %v460 = vsel %vm299, %v457, %v459
        %v464 = vsel %vm299, %v459, %v457
        %465 = vrot.lane.b32.xlu0 %v407, 95
        %v466 = vpop.permute.xlu0 %465
        %467 = vrot.lane.b32.xlu0 %v408, 95
        %v468 = vpop.permute.xlu0 %467
        %v469 = vsel %vm309, %v466, %v468
        %v473 = vsel %vm309, %v468, %v466
        %474 = vrot.lane.b32.xlu0 %v407, 94
        %v475 = vpop.permute.xlu0 %474
        %476 = vrot.lane.b32.xlu0 %v408, 94
        %v477 = vpop.permute.xlu0 %476
        %v478 = vsel %vm319, %v475, %v477
        %v482 = vsel %vm319, %v477, %v475
        %v483 = vld [vmem:[%s3] sm:$0xff]
        %v484 = vld [vmem:[%s4] sm:$0xff]
        %486 = vset.pattern.permute.xlu0 0
        %487 = vperm.xlu0 %486, %v484
        %v488 = vpop.permute.xlu0 %487
        %v491 = vsel %vm332, %v483, 0
        %493 = vmatprep.subr.mxu0 %v408
        %494 = vmatpush1.msra.mxu0 %v407
        %495 = vmatprep.subr.mxu0 %v419
        %496 = vmatpush1.msra.mxu0 %v415
        %497 = vmatprep.subr.mxu0 %v428
        %498 = vmatpush1.msra.mxu0 %v424
        %499 = vmatprep.subr.mxu0 %v437
        %500 = vmatpush1.msra.mxu0 %v433
        %501 = vmatprep.subr.mxu0 %v446
        %502 = vmatpush1.msra.mxu0 %v442
        %503 = vmatprep.subr.mxu0 %v455
        %504 = vmatpush1.msra.mxu0 %v451
        %505 = vmatprep.subr.mxu0 %v464
        %506 = vmatpush1.msra.mxu0 %v460
        %507 = vmatprep.subr.mxu0 %v473
        %508 = vmatpush1.msra.mxu0 %v469
        %509 = vmatprep.subr.mxu0 %v482
        %510 = vmatpush1.msra.mxu0 %v478
        %511 = vmatprep.subr.mxu0 0.0
        %512 = vmatpush1.msra.mxu0 0.0
        %513 = vmatprep.subr.mxu0 0.0
        %514 = vmatpush1.msra.mxu0 0.0
        %515 = vmatprep.subr.mxu0 0.0
        %516 = vmatpush1.msra.mxu0 0.0
        %517 = vmatprep.subr.mxu0 0.0
        %518 = vmatpush1.msra.mxu0 0.0
        %519 = vmatprep.subr.mxu0 0.0
        %520 = vmatpush1.msra.mxu0 0.0
        %521 = vmatprep.subr.mxu0 0.0
        %522 = vmatpush1.msra.mxu0 0.0
        %523 = vmatprep.subr.mxu0 0.0
        %524 = vmatpush1.msra.mxu0 0.0
        %525 = vmatprep.subr.mxu0 0.0
        %526 = vmatpush1.msra.mxu0 0.0
        %527 = vmatprep.subr.mxu0 0.0
        %528 = vmatpush1.msra.mxu0 0.0
        %529 = vmatprep.subr.mxu0 0.0
        %530 = vmatpush1.msra.mxu0 0.0
        %531 = vmatprep.subr.mxu0 0.0
        %532 = vmatpush1.msra.mxu0 0.0
        %533 = vmatprep.subr.mxu0 0.0
        %534 = vmatpush1.msra.mxu0 0.0
        %535 = vmatprep.subr.mxu0 0.0
        %536 = vmatpush1.msra.mxu0 0.0
        %537 = vmatprep.subr.mxu0 0.0
        %538 = vmatpush1.msra.mxu0 0.0
        %539 = vmatprep.subr.mxu0 0.0
        %540 = vmatpush1.msra.mxu0 0.0
        %541 = vmatprep.subr.mxu0 0.0
        %542 = vmatpush1.msra.mxu0 0.0
        %543 = vmatprep.subr.mxu0 0.0
        %544 = vmatpush1.msra.mxu0 0.0
        %545 = vmatprep.subr.mxu0 0.0
        %546 = vmatpush1.msra.mxu0 0.0
        %547 = vmatprep.subr.mxu0 0.0
        %548 = vmatpush1.msra.mxu0 0.0
        %549 = vmatprep.subr.mxu0 0.0
        %550 = vmatpush1.msra.mxu0 0.0
        %551 = vmatprep.subr.mxu0 0.0
        %552 = vmatpush1.msra.mxu0 0.0
        %553 = vmatprep.subr.mxu0 0.0
        %554 = vmatpush1.msra.mxu0 0.0
        %555 = vmatprep.subr.mxu0 0.0
        %556 = vmatpush1.msra.mxu0 0.0
        %557 = vmatprep.mubr.f32.mxu0 0.0
        %558 = vmatmul.mubr.f32.gmra.mrb[0].mxu0 %v491
        %v559 = vpop.f32.mrb[0].mxu0
        %v560 = vadd.f32 %v488, %v559
        %v561 = vpop.f32.mrb[0].mxu0
        %v562 = vadd.f32 %v488, %v561
        %563 = vdwg.mxu0
        %564 = vst [vmem:[%s240] sm:$0xff] %v560
        %565 = vst [vmem:[%s240 + $0x8] sm:$0xff] %v562
        %s566 = sand.u32 %s140, 1
        %s567 = scalar_lea.sflag [#allocation4], %s566
        %s568 = sand.u32 %s140, 1
        %s569 = smul.addr %s568, 16
        %s570 = scalar_lea.vmem [#allocation5], %s569
        // Predicated region
        $region45: #{tpu_custom_call.1} parent=39 // pred_check
          %p571 = pneg %p150
        $region46: #{tpu_custom_call.1} parent=39 // pred_check_branch
          %573 = sbr.rel (%p571) target = $region48
        $region47: #{tpu_custom_call.1} parent=39 // pred_region
          %s575 = ssub.s32 256, 256
          %576 = vsyncadd %s567, %s575
          %s577 = smul.addr %s22, 2
          %s578 = smul.addr %s577, 128
          %s579 = scalar_lea.hbm %s5, %s578
          %s581 = sshll.u32 %s570, 4
          %s582 = int_to_ptr.vmem [resolvable:$true] %s581
          %584 = dma.vmem_to_hbm [thread:$0]  %s582, 256, %s579, %s567
        $region48: #{tpu_custom_call.1} parent=39 // pred_fallthru
          _
      $region40: #{tpu_custom_call.1} parent=5 // pred_fallthru
        _
      %p585 = scmp.le.s32.totalorder 2, %s17
      // Predicated region
      $region49: #{tpu_custom_call.1} parent=5 // pred_check
        %p586 = pneg %p585
      $region50: #{tpu_custom_call.1} parent=5 // pred_check_branch
        %588 = sbr.rel (%p586) target = $region52
      $region51: #{tpu_custom_call.1} parent=5 // pred_region
        %s589 = ssub.s32 %s17, 2
        // Predicated region
        $region53: #{tpu_custom_call.1} parent=51 // pred_check
          %p590 = pneg %p156
        $region54: #{tpu_custom_call.1} parent=51 // pred_check_branch
          %592 = sbr.rel (%p590) target = $region56
        $region55: #{tpu_custom_call.1} parent=51 // pred_region
          %s593 = sand.u32 %s141, 1
          %s594 = scalar_lea.sflag [#allocation4], %s593
          %s595 = sand.u32 %s141, 1
          %s596 = smul.addr %s595, 16
          %s597 = scalar_lea.vmem [#allocation5], %s596
          %598 = dma.done %s594, 256
        $region56: #{tpu_custom_call.1} parent=51 // pred_fallthru
          _
      $region52: #{tpu_custom_call.1} parent=5 // pred_fallthru
        _
    $region6: #{tpu_custom_call.1} parent=1 // loop_footer
      %s21 = sadd.s32 1, %s17
    $region7: #{tpu_custom_call.1} parent=1 // loop_footer_branch
      %16 = sbr.rel target = $region3
    $region8: #{tpu_custom_call.1} parent=1 // loop_exit
      _
    %599 = vsyncpa [#allocation3], 1
    %s600 = scalar_lea.sflag [#allocation3], 1
    %601 = vsyncpa %s600, 1
    %602 = vsyncpa [#allocation4], 1
    %s603 = scalar_lea.sflag [#allocation4], 1
    %604 = vsyncpa %s603, 1

</llo_original>
